<compile_context>
chip_gen: v7x
topology: tpu7x:2x2x1
jax: 0.10.0
libtpu: 0.0.40
codegen_flags: <defaults>
</compile_context>

<pallas_src>
import jax
import jax.numpy as jnp
from jax.experimental import pallas as pl
from jax.experimental.pallas import tpu as pltpu

F_IN = 123          # PyTorch Linear(123, 1)
F_PAD = 128         # padded feature width (one full lane of a vreg)


def _linear_sigmoid_kernel(x_ref, w_ref, b_ref, o_ref):
    # x_ref: [TB, 128] (VMEM), w_ref: [1, 128] (VMEM, resident),
    # b_ref: [1, 1] (SMEM), o_ref: [TB, 1] (VMEM)
    x = x_ref[...]
    w = w_ref[...]                                  # [1, 128], broadcasts over rows
    b = b_ref[0, 0]                                 # scalar read from SMEM
    y = jnp.sum(x * w, axis=-1, keepdims=True)      # VPU mul + XLU lane reduce -> [TB, 1]
    o_ref[...] = jax.nn.sigmoid(y + b).astype(o_ref.dtype)


def libsvm_forward(x, weight, bias, *, max_tile=1024):
    """x: [B, 123] f32, weight: [1, 123] f32 (PyTorch layout), bias: [1] f32."""
    B, F = x.shape
    assert F == F_IN and weight.shape == (1, F_IN) and bias.shape == (1,)

    # Tile size: multiple of 8 sublanes, capped for small batches.
    b_round8 = ((B + 7) // 8) * 8
    TB = min(max_tile, b_round8)
    B_pad = ((B + TB - 1) // TB) * TB

    # Zero-pad batch to a multiple of TB and features to 128 (zeros are inert
    # in the dot product).
    x_p = jnp.pad(x.astype(jnp.float32), ((0, B_pad - B), (0, F_PAD - F)))
    w_p = jnp.pad(weight.astype(jnp.float32), ((0, 0), (0, F_PAD - F)))   # [1, 128]
    b2 = bias.reshape(1, 1).astype(jnp.float32)                           # [1, 1]

    grid = (B_pad // TB,)

    out = pl.pallas_call(
        _linear_sigmoid_kernel,
        out_shape=jax.ShapeDtypeStruct((B_pad, 1), jnp.float32),
        grid=grid,
        in_specs=[
            pl.BlockSpec((TB, F_PAD), lambda i: (i, 0)),                  # x tile (streamed)
            pl.BlockSpec((1, F_PAD), lambda i: (0, 0)),                   # weight (resident)
            pl.BlockSpec(memory_space=pltpu.MemorySpace.SMEM),            # bias scalar
        ],
        out_specs=pl.BlockSpec((TB, 1), lambda i: (i, 0)),
        compiler_params=pltpu.CompilerParams(
            dimension_semantics=("parallel",),
        ),
        cost_estimate=pl.CostEstimate(
            flops=2 * B_pad * F_PAD,
            transcendentals=B_pad,
            bytes_accessed=B_pad * F_PAD * 4 + B_pad * 4 + F_PAD * 4,
        ),
    )(x_p, w_p, b2)

    return out[:B]


if __name__ == "__main__":
    key = jax.random.PRNGKey(0)
    k_x, k_w, k_b, k_x2 = jax.random.split(key, 4)

    # Deterministic parameter init (mimics torch.nn.Linear uniform(-1/sqrt(F), 1/sqrt(F)))
    bound = 1.0 / jnp.sqrt(jnp.float32(F_IN))
    weight = jax.random.uniform(k_w, (1, F_IN), jnp.float32, -bound, bound)
    bias = jax.random.uniform(k_b, (1,), jnp.float32, -bound, bound)

    # Small primary check (B = 8)
    B1 = 8
    x1 = jax.random.normal(k_x, (B1, F_IN), jnp.float32)
    out1 = jax.block_until_ready(libsvm_forward(x1, weight, bias))
    ref1 = jax.nn.sigmoid(x1 @ weight.T + bias)
    assert out1.shape == (B1, 1)
    assert jnp.allclose(out1, ref1, atol=1e-5), "mismatch vs reference (B=8)"

    # Secondary check with a batch that is not a multiple of 8 (exercises padding)
    B2 = 37
    x2 = jax.random.normal(k_x2, (B2, F_IN), jnp.float32)
    out2 = jax.block_until_ready(libsvm_forward(x2, weight, bias))
    ref2 = jax.nn.sigmoid(x2 @ weight.T + bias)
    assert out2.shape == (B2, 1)
    assert jnp.allclose(out2, ref2, atol=1e-5), "mismatch vs reference (B=37)"

    print("KERNEL_OK")
</pallas_src>

<mosaic_0001>
module attributes {stable_mosaic.version = 11 : i64} {
  func.func @_linear_sigmoid_kernel(%arg0: i32, %arg1: memref<8x128xf32, #tpu.memory_space<vmem>>, %arg2: memref<1x128xf32, #tpu.memory_space<vmem>>, %arg3: memref<1x1xf32, #tpu.memory_space<smem>>, %arg4: memref<8x1xf32, #tpu.memory_space<vmem>>) attributes {dimension_semantics = [#tpu.dimension_semantics<parallel>], iteration_bounds = array<i64: 1>, scalar_prefetch = 0 : i64, scratch_operands = 0 : i64, tpu.core_type = #tpu.core_type<tc>, window_params = [{transform_indices = @transform_0, window_bounds = array<i64: 8, 128>}, {pipeline_mode = #tpu.pipeline_mode<synchronous>, transform_indices = @transform_1, window_bounds = array<i64: 1, 128>}, {transform_indices = @transform_2, window_bounds = array<i64: 1, 1>}, {transform_indices = @transform_3, window_bounds = array<i64: 8, 1>}]} {
    %c0 = arith.constant 0 : index
    %c0_0 = arith.constant 0 : index
    %0 = vector.load %arg1[%c0, %c0_0] : memref<8x128xf32, #tpu.memory_space<vmem>>, vector<8x128xf32>
    %c0_1 = arith.constant 0 : index
    %c0_2 = arith.constant 0 : index
    %1 = vector.load %arg2[%c0_1, %c0_2] : memref<1x128xf32, #tpu.memory_space<vmem>>, vector<1x128xf32>
    %c0_3 = arith.constant 0 : index
    %c0_4 = arith.constant 0 : index
    %2 = memref.load %arg3[%c0_3, %c0_4] : memref<1x1xf32, #tpu.memory_space<smem>>
    %3 = vector.broadcast %1 : vector<1x128xf32> to vector<8x128xf32>
    %4 = arith.mulf %0, %3 : vector<8x128xf32>
    %cst = arith.constant dense<0.000000e+00> : vector<8xf32>
    %5 = vector.multi_reduction <add>, %4, %cst [1] : vector<8x128xf32> to vector<8xf32>
    %6 = vector.shape_cast %5 : vector<8xf32> to vector<8x1xf32>
    %7 = vector.broadcast %2 : f32 to vector<8x1xf32>
    %8 = arith.addf %6, %7 : vector<8x1xf32>
    %9 = arith.negf %8 : vector<8x1xf32>
    %10 = math.exp %9 : vector<8x1xf32>
    %cst_5 = arith.constant 1.000000e+00 : f32
    %11 = vector.broadcast %cst_5 : f32 to vector<8x1xf32>
    %12 = arith.addf %11, %10 : vector<8x1xf32>
    %13 = arith.divf %11, %12 : vector<8x1xf32>
    %c0_6 = arith.constant 0 : index
    %c0_7 = arith.constant 0 : index
    %14 = vector.load %arg4[%c0_6, %c0_7] : memref<8x1xf32, #tpu.memory_space<vmem>>, vector<8x1xf32>
    tpu.vector_store %arg4[%c0_6, %c0_7], %13 {strides = array<i32>} : memref<8x1xf32, #tpu.memory_space<vmem>>, vector<8x1xf32>,
    return
  }
  func.func @transform_0(%arg0: i32) -> (i32, i32) {
    %c0_i32 = arith.constant 0 : i32
    %c0_i32_0 = arith.constant 0 : i32
    return %arg0, %c0_i32 : i32, i32
  }
  func.func @transform_1(%arg0: i32) -> (i32, i32) {
    %c0_i32 = arith.constant 0 : i32
    %c0_i32_0 = arith.constant 0 : i32
    %c0_i32_1 = arith.constant 0 : i32
    return %c0_i32, %c0_i32_0 : i32, i32
  }
  func.func @transform_2(%arg0: i32) -> (i32, i32) {
    %c0_i32 = arith.constant 0 : i32
    %c0_i32_0 = arith.constant 0 : i32
    %c0_i32_1 = arith.constant 0 : i32
    return %c0_i32, %c0_i32_0 : i32, i32
  }
  func.func @transform_3(%arg0: i32) -> (i32, i32) {
    %c0_i32 = arith.constant 0 : i32
    %c0_i32_0 = arith.constant 0 : i32
    return %arg0, %c0_i32 : i32, i32
  }
}

</mosaic_0001>

<llo_original>
// kernel: tpu_custom_call.1
$region0: #{tpu_custom_call.1}
  #allocation0 [shape = 'u32[]', space=smem, size = 0x4, offset = 0x4, fixed_abs, tag = 'smem constant byte address 0x4 - core index']
  #allocation1 [shape = 'u32[144,128]{1,0:T(1,128)}', space=vmem, size = 0x12000, scoped, tag = 'internal scratch']
  #allocation2 [shape = 'f32[1,1]{1,0:T(1,128)S(6)}', space=smem, size = 0x200, scoped, tag = 'scoped memory for tpu_custom_call.1']
  %s0 = inlined_call_operand.hbm [shape: f32[8,128], index: 0, kind: input, shape index: {}]
  %s1 = inlined_call_operand.vmem [shape: f32[1,128], index: 1, kind: input, shape index: {}]
  %s2 = inlined_call_operand.<no memory space> [shape: f32[1,1], index: 2, kind: input, shape index: {}]
  %s3 = inlined_call_operand.vmem [shape: f32[8,1], index: 3, kind: output, shape index: {}]
  %s4 = sld [smem:[#allocation0]]
  $region26: #{tpu_custom_call.1} parent=0
    _
  %s6 = ssub.s32 1, %s4
  %s7 = scalar_select 0, %s6, %s4
  %8 = sst [smem:[#allocation2]] %s2
  $region1: #{tpu_custom_call.1} parent=0
    #allocation3 [shape = 'u8[4096]{0}', space=vmem, size = 0x1000, scoped, tag = 'input window, operand 0, single buffered']
    #allocation4 [shape = 's32[1]{0}', space=sflag, size = 0x4, scoped, tag = 'scoped memory for tpu_custom_call.1']
    %9 = vsyncpa [#allocation4], 0
    // Predicated region
    $region2: #{tpu_custom_call.1} parent=1 // pred_check
      _
    $region3: #{tpu_custom_call.1} parent=1 // pred_check_branch
      %11 = sbr.rel (0) target = $region5
    $region4: #{tpu_custom_call.1} parent=1 // pred_region
      %s13 = ssub.s32 128, 128
      %14 = vsyncadd [#allocation4], %s13
      %s16 = sshll.u32 [#allocation3], 4
      %s17 = int_to_ptr.vmem [resolvable:$true] %s16
      %19 = dma.hbm_to_vmem [thread:$0]  %s0, 128, %s17, [#allocation4]
    $region5: #{tpu_custom_call.1} parent=1 // pred_fallthru
      _
    // Predicated region
    $region6: #{tpu_custom_call.1} parent=1 // pred_check
      _
    $region7: #{tpu_custom_call.1} parent=1 // pred_check_branch
      %21 = sbr.rel (0) target = $region9
    $region8: #{tpu_custom_call.1} parent=1 // pred_region
      _
    $region9: #{tpu_custom_call.1} parent=1 // pred_fallthru
      _
    // Predicated region
    $region10: #{tpu_custom_call.1} parent=1 // pred_check
      _
    $region11: #{tpu_custom_call.1} parent=1 // pred_check_branch
      %23 = sbr.rel (0) target = $region13
    $region12: #{tpu_custom_call.1} parent=1 // pred_region
      _
    $region13: #{tpu_custom_call.1} parent=1 // pred_fallthru
      _
    // Predicated region
    $region14: #{tpu_custom_call.1} parent=1 // pred_check
      _
    $region15: #{tpu_custom_call.1} parent=1 // pred_check_branch
      %25 = sbr.rel (0) target = $region17
    $region16: #{tpu_custom_call.1} parent=1 // pred_region
      %26 = dma.done [#allocation4], 128
    $region17: #{tpu_custom_call.1} parent=1 // pred_fallthru
      _
    %v27 = vld [vmem:[#allocation3] sm:$0xff]
    %v28 = vld [vmem:[%s1] sm:$0x1]
    %s29 = sld [smem:[#allocation2]]
    %v31 = vlaneseq
    %v32 = vshrl.u32 %v31, 7
    %v33 = vsub.s32 0, %v32
    %v34 = vrot.slane %v28, %v33
    %v36 = vmul.f32 %v27, %v34
    %37 = vadd.xlane.f32.xlu0 %v36
    %v38 = vpop.xlane.xlu0 %37
    %v39 = vstv %s29
    %v40 = vadd.f32 %v38, %v39
    %v41 = vxor.u32 %v40, 2147483648
    %v42 = vmul.f32 %v41, 1.442695
    %v43 = vpow.pop %v42
    %v44 = vadd.f32 %v43, 1.0
    %v45 = vrcp.pop %v44
    %v46 = vmul.f32 1.0, %v45
    %vm47 = vcmask 7168
    %48 = vst.msk [vmem:[%s3] sm:$0xff] %vm47, %v46
    // Predicated region
    $region18: #{tpu_custom_call.1} parent=1 // pred_check
      _
    $region19: #{tpu_custom_call.1} parent=1 // pred_check_branch
      %50 = sbr.rel (0) target = $region21
    $region20: #{tpu_custom_call.1} parent=1 // pred_region
      _
    $region21: #{tpu_custom_call.1} parent=1 // pred_fallthru
      _
    // Predicated region
    $region22: #{tpu_custom_call.1} parent=1 // pred_check
      _
    $region23: #{tpu_custom_call.1} parent=1 // pred_check_branch
      %52 = sbr.rel (0) target = $region25
    $region24: #{tpu_custom_call.1} parent=1 // pred_region
      _
    $region25: #{tpu_custom_call.1} parent=1 // pred_fallthru
      _
    %53 = vsyncpa [#allocation4], 1

</llo_original>
